<compile_context>
chip_gen: v7x
topology: tpu7x:2x2x1
jax: 0.10.0
libtpu: 0.0.40
codegen_flags: <defaults>
</compile_context>

<pallas_src>
import functools

import jax
import jax.numpy as jnp
from jax.experimental import pallas as pl
from jax.experimental.pallas import tpu as pltpu


def _round_up(x, m):
    return (x + m - 1) // m * m


# --------------------------------------------------------------------------
# Pallas kernel: one propagation layer, E_l = G @ E_{l-1}
#   tiled over (row tiles, reduction tiles); f32 accumulator in VMEM.
# --------------------------------------------------------------------------
def _layer_matmul_kernel(g_ref, e_ref, o_ref, acc_ref):
    @pl.when(pl.program_id(1) == 0)
    def _():
        acc_ref[...] = jnp.zeros_like(acc_ref)

    acc_ref[...] += jnp.dot(
        g_ref[...], e_ref[...], preferred_element_type=jnp.float32
    )

    @pl.when(pl.program_id(1) == pl.num_programs(1) - 1)
    def _():
        o_ref[...] = acc_ref[...]


def _lightgcn_layer(graph_bf16, e_bf16, *, tile):
    """graph_bf16: (Np, Np) bf16, e_bf16: (Np, Dp) bf16 -> (Np, Dp) f32."""
    Np = graph_bf16.shape[0]
    Dp = e_bf16.shape[1]
    assert Np % tile == 0 and Dp % 128 == 0
    m_tiles = Np // tile
    k_tiles = Np // tile
    return pl.pallas_call(
        _layer_matmul_kernel,
        out_shape=jax.ShapeDtypeStruct((Np, Dp), jnp.float32),
        grid=(m_tiles, k_tiles),
        in_specs=[
            pl.BlockSpec((tile, tile), lambda i, k: (i, k)),
            pl.BlockSpec((tile, Dp), lambda i, k: (k, 0)),
        ],
        out_specs=pl.BlockSpec((tile, Dp), lambda i, k: (i, 0)),
        scratch_shapes=[pltpu.VMEM((tile, Dp), jnp.float32)],
        compiler_params=pltpu.CompilerParams(
            dimension_semantics=("parallel", "arbitrary"),
            vmem_limit_bytes=48 * 1024 * 1024,
        ),
    )(graph_bf16, e_bf16)


@functools.partial(jax.jit, static_argnames=("n_layers", "tile"))
def _propagate(graph_bf16, emb_pad_f32, n_layers, tile):
    """sum_{l=0..L} E_l / (L+1), with E_l = G @ E_{l-1}; f32 layer sum."""
    acc = emb_pad_f32
    e_bf = emb_pad_f32.astype(jnp.bfloat16)
    for _ in range(n_layers):
        e_f32 = _lightgcn_layer(graph_bf16, e_bf, tile=tile)
        acc = acc + e_f32
        e_bf = e_f32.astype(jnp.bfloat16)
    return acc * (1.0 / float(n_layers + 1))


# --------------------------------------------------------------------------
# LightGCN module (JAX)
# --------------------------------------------------------------------------
class LightGCN:
    def __init__(self, n_users, n_items, n_layers, embedding_dim, graph, key):
        self.n_users = n_users
        self.n_items = n_items
        self.n_layers = n_layers
        self.embedding_dim = embedding_dim

        N = n_users + n_items
        self.N = N
        # tile / padding choices (lane-dense D, tile-aligned N)
        self.tile = 256 if N >= 256 else 128
        self.Np = _round_up(N, self.tile)
        self.Dp = _round_up(embedding_dim, 128)

        # dense normalized adjacency, zero-padded, stored bf16 (streamed operand)
        g = jnp.asarray(graph, dtype=jnp.float32)
        assert g.shape == (N, N)
        g_pad = jnp.zeros((self.Np, self.Np), dtype=jnp.float32).at[:N, :N].set(g)
        self.graph = g  # keep f32 original around for reference/debug
        self._graph_bf16 = g_pad.astype(jnp.bfloat16)

        ku, ki = jax.random.split(key)
        # nn.Embedding default init: N(0, 1)
        self.user_embedding = jax.random.normal(
            ku, (n_users, embedding_dim), dtype=jnp.float32
        )
        self.item_embedding = jax.random.normal(
            ki, (n_items, embedding_dim), dtype=jnp.float32
        )

    def _get_final_embedding(self):
        emb = jnp.concatenate([self.user_embedding, self.item_embedding], axis=0)
        emb_pad = (
            jnp.zeros((self.Np, self.Dp), dtype=jnp.float32)
            .at[: self.N, : self.embedding_dim]
            .set(emb)
        )
        final_pad = _propagate(self._graph_bf16, emb_pad, self.n_layers, self.tile)
        final = final_pad[: self.N, : self.embedding_dim]
        user_final = final[: self.n_users]
        item_final = final[self.n_users :]
        return user_final, item_final

    def forward(self, users, pos_items, neg_items=None):
        user_final, item_final = self._get_final_embedding()
        assert users.shape[0] == pos_items.shape[0]
        if neg_items is not None:
            assert users.shape[0] == neg_items.shape[0]

        result = {
            "user_embedding": jnp.take(self.user_embedding, users, axis=0),
            "pos_item_embedding": jnp.take(self.item_embedding, pos_items, axis=0),
            "user_final_embedding": jnp.take(user_final, users, axis=0),
            "pos_item_final_embedding": jnp.take(item_final, pos_items, axis=0),
        }
        if neg_items is not None:
            result["neg_item_embedding"] = jnp.take(
                self.item_embedding, neg_items, axis=0
            )
            result["neg_item_final_embedding"] = jnp.take(
                item_final, neg_items, axis=0
            )
        return result

    def get_users_rating_prediction(self, users):
        user_final, item_final = self._get_final_embedding()
        u = jnp.take(user_final, users, axis=0)
        return jax.nn.sigmoid(u @ item_final.T)


# --------------------------------------------------------------------------
# References (pure JAX) for correctness checks
# --------------------------------------------------------------------------
def _reference_final_embedding_bf16(graph_bf16, emb_pad_f32, n_layers):
    """Mirrors the kernel's bf16-operand / f32-accumulator arithmetic."""
    acc = emb_pad_f32
    e = emb_pad_f32.astype(jnp.bfloat16)
    for _ in range(n_layers):
        e_f32 = jnp.dot(graph_bf16, e, preferred_element_type=jnp.float32)
        acc = acc + e_f32
        e = e_f32.astype(jnp.bfloat16)
    return acc / (n_layers + 1)


def _reference_final_embedding_f32(graph, embedding, n_layers):
    e = embedding
    layers = [e]
    for _ in range(n_layers):
        e = graph @ e
        layers.append(e)
    return jnp.mean(jnp.stack(layers, axis=1), axis=1)


def _build_normalized_graph(n_users, n_items, key):
    """Dense normalized bipartite adjacency D^{-1/2} A D^{-1/2}."""
    N = n_users + n_items
    r = jax.random.bernoulli(key, p=0.05, shape=(n_users, n_items)).astype(jnp.float32)
    A = jnp.zeros((N, N), dtype=jnp.float32)
    A = A.at[:n_users, n_users:].set(r)
    A = A.at[n_users:, :n_users].set(r.T)
    deg = jnp.sum(A, axis=1)
    d_inv_sqrt = jnp.where(deg > 0, 1.0 / jnp.sqrt(jnp.maximum(deg, 1e-12)), 0.0)
    return d_inv_sqrt[:, None] * A * d_inv_sqrt[None, :]


if __name__ == "__main__":
    key = jax.random.PRNGKey(0)
    k_graph, k_emb, k_users, k_pos, k_neg = jax.random.split(key, 5)

    n_users, n_items = 48, 80      # N = 128
    n_layers = 3
    embedding_dim = 32
    batch = 8

    graph = _build_normalized_graph(n_users, n_items, k_graph)
    model = LightGCN(n_users, n_items, n_layers, embedding_dim, graph, k_emb)

    users = jax.random.randint(k_users, (batch,), 0, n_users)
    pos_items = jax.random.randint(k_pos, (batch,), 0, n_items)
    neg_items = jax.random.randint(k_neg, (batch,), 0, n_items)

    out = model.forward(users, pos_items, neg_items=neg_items)
    out = jax.tree_util.tree_map(jax.block_until_ready, out)

    # --- checks ---------------------------------------------------------
    N = n_users + n_items
    emb0 = jnp.concatenate([model.user_embedding, model.item_embedding], axis=0)
    emb_pad = (
        jnp.zeros((model.Np, model.Dp), dtype=jnp.float32)
        .at[:N, :embedding_dim]
        .set(emb0)
    )

    # (a) exact-arithmetic mirror of the kernel (bf16 operands, f32 accum)
    ref_bf = _reference_final_embedding_bf16(model._graph_bf16, emb_pad, n_layers)
    ref_bf = ref_bf[:N, :embedding_dim]
    ref_u_bf = jnp.take(ref_bf[:n_users], users, axis=0)
    ref_p_bf = jnp.take(ref_bf[n_users:], pos_items, axis=0)
    assert jnp.allclose(out["user_final_embedding"], ref_u_bf, atol=1e-3, rtol=1e-3)
    assert jnp.allclose(out["pos_item_final_embedding"], ref_p_bf, atol=1e-3, rtol=1e-3)

    # (b) full-f32 reference (loose tolerance for the bf16 graph/operand cast)
    ref_f32 = _reference_final_embedding_f32(model.graph, emb0, n_layers)
    ref_u = jnp.take(ref_f32[:n_users], users, axis=0)
    ref_p = jnp.take(ref_f32[n_users:], pos_items, axis=0)
    assert jnp.allclose(out["user_final_embedding"], ref_u, atol=5e-2, rtol=5e-2)
    assert jnp.allclose(out["pos_item_final_embedding"], ref_p, atol=5e-2, rtol=5e-2)

    assert out["user_embedding"].shape == (batch, embedding_dim)
    assert out["neg_item_final_embedding"].shape == (batch, embedding_dim)

    ratings = jax.block_until_ready(model.get_users_rating_prediction(users))
    assert ratings.shape == (batch, n_items)

    print("KERNEL_OK")
</pallas_src>

<mosaic_0001>
module attributes {stable_mosaic.version = 11 : i64} {
  func.func @_layer_matmul_kernel(%arg0: i32, %arg1: i32, %arg2: memref<128x128xbf16, #tpu.memory_space<vmem>>, %arg3: memref<128x128xbf16, #tpu.memory_space<vmem>>, %arg4: memref<128x128xf32, #tpu.memory_space<vmem>>, %arg5: memref<128x128xf32, #tpu.memory_space<vmem>>) attributes {dimension_semantics = [#tpu.dimension_semantics<parallel>, #tpu.dimension_semantics<arbitrary>], iteration_bounds = array<i64: 1, 1>, scalar_prefetch = 0 : i64, scratch_operands = 1 : i64, tpu.core_type = #tpu.core_type<tc>, window_params = [{transform_indices = @transform_0, window_bounds = array<i64: 128, 128>}, {transform_indices = @transform_1, window_bounds = array<i64: 128, 128>}, {transform_indices = @transform_2, window_bounds = array<i64: 128, 128>}]} {
    %c0_i32 = arith.constant 0 : i32
    %0 = arith.cmpi eq, %arg1, %c0_i32 : i32
    %1 = arith.extui %0 : i1 to i32
    %c0_i32_0 = arith.constant 0 : i32
    %2 = arith.cmpi ne, %1, %c0_i32_0 : i32
    scf.if %2 {
      %cst_10 = arith.constant 0.000000e+00 : f32
      %12 = vector.broadcast %cst_10 : f32 to vector<128x128xf32>
      %c0_11 = arith.constant 0 : index
      %c0_12 = arith.constant 0 : index
      %13 = vector.load %arg5[%c0_11, %c0_12] : memref<128x128xf32, #tpu.memory_space<vmem>>, vector<128x128xf32>
      tpu.vector_store %arg5[%c0_11, %c0_12], %12 {strides = array<i32>} : memref<128x128xf32, #tpu.memory_space<vmem>>, vector<128x128xf32>,
    } else {
    }
    %c0 = arith.constant 0 : index
    %c0_1 = arith.constant 0 : index
    %3 = vector.load %arg5[%c0, %c0_1] : memref<128x128xf32, #tpu.memory_space<vmem>>, vector<128x128xf32>
    %c0_2 = arith.constant 0 : index
    %c0_3 = arith.constant 0 : index
    %4 = vector.load %arg2[%c0_2, %c0_3] : memref<128x128xbf16, #tpu.memory_space<vmem>>, vector<128x128xbf16>
    %c0_4 = arith.constant 0 : index
    %c0_5 = arith.constant 0 : index
    %5 = vector.load %arg3[%c0_4, %c0_5] : memref<128x128xbf16, #tpu.memory_space<vmem>>, vector<128x128xbf16>
    %cst = arith.constant dense<0.000000e+00> : vector<128x128xf32>
    %6 = tpu.matmul %4, %5, %cst {dimension_numbers = #tpu.dot_dimension_numbers<[1], [0], [0], [1], [0, 0, 1, 1], [], []>} : vector<128x128xbf16>, vector<128x128xbf16>, vector<128x128xf32> -> vector<128x128xf32>
    %7 = arith.addf %3, %6 : vector<128x128xf32>
    %c0_6 = arith.constant 0 : index
    %c0_7 = arith.constant 0 : index
    %8 = vector.load %arg5[%c0_6, %c0_7] : memref<128x128xf32, #tpu.memory_space<vmem>>, vector<128x128xf32>
    tpu.vector_store %arg5[%c0_6, %c0_7], %7 {strides = array<i32>} : memref<128x128xf32, #tpu.memory_space<vmem>>, vector<128x128xf32>,
    %c0_i32_8 = arith.constant 0 : i32
    %9 = arith.cmpi eq, %arg1, %c0_i32_8 : i32
    %10 = arith.extui %9 : i1 to i32
    %c0_i32_9 = arith.constant 0 : i32
    %11 = arith.cmpi ne, %10, %c0_i32_9 : i32
    scf.if %11 {
      %c0_10 = arith.constant 0 : index
      %c0_11 = arith.constant 0 : index
      %12 = vector.load %arg5[%c0_10, %c0_11] : memref<128x128xf32, #tpu.memory_space<vmem>>, vector<128x128xf32>
      %c0_12 = arith.constant 0 : index
      %c0_13 = arith.constant 0 : index
      %13 = vector.load %arg4[%c0_12, %c0_13] : memref<128x128xf32, #tpu.memory_space<vmem>>, vector<128x128xf32>
      tpu.vector_store %arg4[%c0_12, %c0_13], %12 {strides = array<i32>} : memref<128x128xf32, #tpu.memory_space<vmem>>, vector<128x128xf32>,
    } else {
    }
    return
  }
  func.func @transform_0(%arg0: i32, %arg1: i32) -> (i32, i32) {
    %c0_i32 = arith.constant 0 : i32
    return %arg0, %arg1 : i32, i32
  }
  func.func @transform_1(%arg0: i32, %arg1: i32) -> (i32, i32) {
    %c0_i32 = arith.constant 0 : i32
    %c0_i32_0 = arith.constant 0 : i32
    return %arg1, %c0_i32 : i32, i32
  }
  func.func @transform_2(%arg0: i32, %arg1: i32) -> (i32, i32) {
    %c0_i32 = arith.constant 0 : i32
    %c0_i32_0 = arith.constant 0 : i32
    return %arg0, %c0_i32 : i32, i32
  }
}

</mosaic_0001>

<llo_original>
// kernel: _propagate.3
$region0: #{_propagate.3}
  #allocation0 [shape = 'u32[]', space=smem, size = 0x4, offset = 0x4, fixed_abs, tag = 'smem constant byte address 0x4 - core index']
  #allocation1 [shape = 'u32[144,128]{1,0:T(1,128)}', space=vmem, size = 0x12000, scoped, tag = 'internal scratch']
  #allocation2 [shape = 'f32[128,128]{1,0:T(8,128)}', space=vmem, size = 0x10000, scoped, tag = 'scratch operand']
  %s0 = inlined_call_operand.vmem [shape: bf16[128,128], index: 0, kind: input, shape index: {}]
  %s1 = inlined_call_operand.vmem [shape: bf16[128,128], index: 1, kind: input, shape index: {}]
  %s2 = inlined_call_operand.vmem [shape: f32[128,128], index: 2, kind: output, shape index: {}]
  %s3 = sld [smem:[#allocation0]]
  $region26: #{_propagate.3} parent=0
    _
  %s5 = ssub.s32 1, %s3
  %s6 = scalar_select 0, %s5, %s3
  // Predicated region
  $region2: #{_propagate.3} parent=0 // pred_check
    _
  $region3: #{_propagate.3} parent=0 // pred_check_branch
    %8 = sbr.rel (0) target = $region5
  $region4: #{_propagate.3} parent=0 // pred_region
    _
  $region5: #{_propagate.3} parent=0 // pred_fallthru
    _
  // Predicated region
  $region6: #{_propagate.3} parent=0 // pred_check
    _
  $region7: #{_propagate.3} parent=0 // pred_check_branch
    %10 = sbr.rel (0) target = $region9
  $region8: #{_propagate.3} parent=0 // pred_region
    _
  $region9: #{_propagate.3} parent=0 // pred_fallthru
    _
  %p12 = scmp.eq.s32.totalorder 0, 0
  // Predicated region
  $region10: #{_propagate.3} parent=0 // pred_check
    %p13 = pneg %p12
  $region11: #{_propagate.3} parent=0 // pred_check_branch
    %15 = sbr.rel (%p13) target = $region13
  $region12: #{_propagate.3} parent=0 // pred_region
    %16 = vst [vmem:[#allocation2] sm:$0xff] 0.0
    %17 = vst [vmem:[#allocation2 + $0x8] sm:$0xff] 0.0
    %18 = vst [vmem:[#allocation2 + $0x10] sm:$0xff] 0.0
    %19 = vst [vmem:[#allocation2 + $0x18] sm:$0xff] 0.0
    %20 = vst [vmem:[#allocation2 + $0x20] sm:$0xff] 0.0
    %21 = vst [vmem:[#allocation2 + $0x28] sm:$0xff] 0.0
    %22 = vst [vmem:[#allocation2 + $0x30] sm:$0xff] 0.0
    %23 = vst [vmem:[#allocation2 + $0x38] sm:$0xff] 0.0
    %24 = vst [vmem:[#allocation2 + $0x40] sm:$0xff] 0.0
    %25 = vst [vmem:[#allocation2 + $0x48] sm:$0xff] 0.0
    %26 = vst [vmem:[#allocation2 + $0x50] sm:$0xff] 0.0
    %27 = vst [vmem:[#allocation2 + $0x58] sm:$0xff] 0.0
    %28 = vst [vmem:[#allocation2 + $0x60] sm:$0xff] 0.0
    %29 = vst [vmem:[#allocation2 + $0x68] sm:$0xff] 0.0
    %30 = vst [vmem:[#allocation2 + $0x70] sm:$0xff] 0.0
    %31 = vst [vmem:[#allocation2 + $0x78] sm:$0xff] 0.0
  $region13: #{_propagate.3} parent=0 // pred_fallthru
    _
  %v32 = vld [vmem:[#allocation2] sm:$0xff]
  %v33 = vld [vmem:[#allocation2 + $0x8] sm:$0xff]
  %v34 = vld [vmem:[#allocation2 + $0x10] sm:$0xff]
  %v35 = vld [vmem:[#allocation2 + $0x18] sm:$0xff]
  %v36 = vld [vmem:[#allocation2 + $0x20] sm:$0xff]
  %v37 = vld [vmem:[#allocation2 + $0x28] sm:$0xff]
  %v38 = vld [vmem:[#allocation2 + $0x30] sm:$0xff]
  %v39 = vld [vmem:[#allocation2 + $0x38] sm:$0xff]
  %v40 = vld [vmem:[#allocation2 + $0x40] sm:$0xff]
  %v41 = vld [vmem:[#allocation2 + $0x48] sm:$0xff]
  %v42 = vld [vmem:[#allocation2 + $0x50] sm:$0xff]
  %v43 = vld [vmem:[#allocation2 + $0x58] sm:$0xff]
  %v44 = vld [vmem:[#allocation2 + $0x60] sm:$0xff]
  %v45 = vld [vmem:[#allocation2 + $0x68] sm:$0xff]
  %v46 = vld [vmem:[#allocation2 + $0x70] sm:$0xff]
  %v47 = vld [vmem:[#allocation2 + $0x78] sm:$0xff]
  %v48 = vld [vmem:[%s0] sm:$0xf]
  %v49 = vld [vmem:[%s0 + $0x4] sm:$0xf]
  %v50 = vld [vmem:[%s0 + $0x8] sm:$0xf]
  %v51 = vld [vmem:[%s0 + $0xc] sm:$0xf]
  %v52 = vld [vmem:[%s0 + $0x10] sm:$0xf]
  %v53 = vld [vmem:[%s0 + $0x14] sm:$0xf]
  %v54 = vld [vmem:[%s0 + $0x18] sm:$0xf]
  %v55 = vld [vmem:[%s0 + $0x1c] sm:$0xf]
  %v56 = vld [vmem:[%s0 + $0x20] sm:$0xf]
  %v57 = vld [vmem:[%s0 + $0x24] sm:$0xf]
  %v58 = vld [vmem:[%s0 + $0x28] sm:$0xf]
  %v59 = vld [vmem:[%s0 + $0x2c] sm:$0xf]
  %v60 = vld [vmem:[%s0 + $0x30] sm:$0xf]
  %v61 = vld [vmem:[%s0 + $0x34] sm:$0xf]
  %v62 = vld [vmem:[%s0 + $0x38] sm:$0xf]
  %v63 = vld [vmem:[%s0 + $0x3c] sm:$0xf]
  %v64 = vld [vmem:[%s1] sm:$0xf]
  %v65 = vld [vmem:[%s1 + $0x4] sm:$0xf]
  %v66 = vld [vmem:[%s1 + $0x8] sm:$0xf]
  %v67 = vld [vmem:[%s1 + $0xc] sm:$0xf]
  %v68 = vld [vmem:[%s1 + $0x10] sm:$0xf]
  %v69 = vld [vmem:[%s1 + $0x14] sm:$0xf]
  %v70 = vld [vmem:[%s1 + $0x18] sm:$0xf]
  %v71 = vld [vmem:[%s1 + $0x1c] sm:$0xf]
  %v72 = vld [vmem:[%s1 + $0x20] sm:$0xf]
  %v73 = vld [vmem:[%s1 + $0x24] sm:$0xf]
  %v74 = vld [vmem:[%s1 + $0x28] sm:$0xf]
  %v75 = vld [vmem:[%s1 + $0x2c] sm:$0xf]
  %v76 = vld [vmem:[%s1 + $0x30] sm:$0xf]
  %v77 = vld [vmem:[%s1 + $0x34] sm:$0xf]
  %v78 = vld [vmem:[%s1 + $0x38] sm:$0xf]
  %v79 = vld [vmem:[%s1 + $0x3c] sm:$0xf]
  %v96 = vunpack.c.l.b16 %v48
  %v97 = vunpack.c.l.b16 %v49
  %v98 = vunpack.c.l.b16 %v50
  %v99 = vunpack.c.l.b16 %v51
  %v100 = vunpack.c.l.b16 %v52
  %v101 = vunpack.c.l.b16 %v53
  %v102 = vunpack.c.l.b16 %v54
  %v103 = vunpack.c.l.b16 %v55
  %v104 = vunpack.c.l.b16 %v56
  %v105 = vunpack.c.l.b16 %v57
  %v106 = vunpack.c.l.b16 %v58
  %v107 = vunpack.c.l.b16 %v59
  %v108 = vunpack.c.l.b16 %v60
  %v109 = vunpack.c.l.b16 %v61
  %v110 = vunpack.c.l.b16 %v62
  %v111 = vunpack.c.l.b16 %v63
  %v112 = vpack.c.b16 %v97, %v96
  %v113 = vpack.c.b16 %v99, %v98
  %v114 = vpack.c.b16 %v101, %v100
  %v115 = vpack.c.b16 %v103, %v102
  %v116 = vpack.c.b16 %v105, %v104
  %v117 = vpack.c.b16 %v107, %v106
  %v118 = vpack.c.b16 %v109, %v108
  %v119 = vpack.c.b16 %v111, %v110
  %v144 = vunpack.c.l.b16 %v64
  %v145 = vunpack.c.l.b16 %v65
  %v146 = vunpack.c.l.b16 %v66
  %v147 = vunpack.c.l.b16 %v67
  %v148 = vunpack.c.l.b16 %v68
  %v149 = vunpack.c.l.b16 %v69
  %v150 = vunpack.c.l.b16 %v70
  %v151 = vunpack.c.l.b16 %v71
  %v152 = vunpack.c.l.b16 %v72
  %v153 = vunpack.c.l.b16 %v73
  %v154 = vunpack.c.l.b16 %v74
  %v155 = vunpack.c.l.b16 %v75
  %v156 = vunpack.c.l.b16 %v76
  %v157 = vunpack.c.l.b16 %v77
  %v158 = vunpack.c.l.b16 %v78
  %v159 = vunpack.c.l.b16 %v79
  %v160 = vpack.c.b16 %v145, %v144
  %v161 = vpack.c.b16 %v147, %v146
  %v162 = vpack.c.b16 %v149, %v148
  %v163 = vpack.c.b16 %v151, %v150
  %v164 = vpack.c.b16 %v153, %v152
  %v165 = vpack.c.b16 %v155, %v154
  %v166 = vpack.c.b16 %v157, %v156
  %v167 = vpack.c.b16 %v159, %v158
  %176 = vmatprep.subr.bf16.mxu0 0
  %177 = vmatpush1.bf16.msra.mxu0 %v160
  %178 = vmatprep.subr.bf16.mxu0 0
  %179 = vmatpush1.bf16.msra.mxu0 %v161
  %180 = vmatprep.subr.bf16.mxu0 0
  %181 = vmatpush1.bf16.msra.mxu0 %v162
  %182 = vmatprep.subr.bf16.mxu0 0
  %183 = vmatpush1.bf16.msra.mxu0 %v163
  %184 = vmatprep.subr.bf16.mxu0 0
  %185 = vmatpush1.bf16.msra.mxu0 %v164
  %186 = vmatprep.subr.bf16.mxu0 0
  %187 = vmatpush1.bf16.msra.mxu0 %v165
  %188 = vmatprep.subr.bf16.mxu0 0
  %189 = vmatpush1.bf16.msra.mxu0 %v166
  %190 = vmatprep.subr.bf16.mxu0 0
  %191 = vmatpush1.bf16.msra.mxu0 %v167
  %192 = vmatprep.subr.bf16.mxu0 0
  %193 = vmatpush1.bf16.msra.mxu0 0
  %194 = vmatprep.subr.bf16.mxu0 0
  %195 = vmatpush1.bf16.msra.mxu0 0
  %196 = vmatprep.subr.bf16.mxu0 0
  %197 = vmatpush1.bf16.msra.mxu0 0
  %198 = vmatprep.subr.bf16.mxu0 0
  %199 = vmatpush1.bf16.msra.mxu0 0
  %200 = vmatprep.subr.bf16.mxu0 0
  %201 = vmatpush1.bf16.msra.mxu0 0
  %202 = vmatprep.subr.bf16.mxu0 0
  %203 = vmatpush1.bf16.msra.mxu0 0
  %204 = vmatprep.subr.bf16.mxu0 0
  %205 = vmatpush1.bf16.msra.mxu0 0
  %206 = vmatprep.subr.bf16.mxu0 0
  %207 = vmatpush1.bf16.msra.mxu0 0
  %208 = vmatprep.mubr.bf16.mxu0 0
  %209 = vmatmul.mubr.bf16.gmra.mrb[0].mxu0 %v112
  %v210 = vpop.f32.mrb[0].mxu0
  %v211 = vadd.f32 0.0, %v210
  %v212 = vpop.f32.mrb[0].mxu0
  %v213 = vpop.f32.mrb[0].mxu0
  %v214 = vadd.f32 0.0, %v213
  %v215 = vpop.f32.mrb[0].mxu0
  %216 = vmatprep.mubr.bf16.mxu0 0
  %217 = vmatmul.mubr.bf16.gmra.mrb[0].mxu0 %v113
  %v218 = vpop.f32.mrb[0].mxu0
  %v219 = vadd.f32 0.0, %v218
  %v220 = vpop.f32.mrb[0].mxu0
  %v221 = vpop.f32.mrb[0].mxu0
  %v222 = vadd.f32 0.0, %v221
  %v223 = vpop.f32.mrb[0].mxu0
  %224 = vmatprep.mubr.bf16.mxu0 0
  %225 = vmatmul.mubr.bf16.gmra.mrb[0].mxu0 %v114
  %v226 = vpop.f32.mrb[0].mxu0
  %v227 = vadd.f32 0.0, %v226
  %v228 = vpop.f32.mrb[0].mxu0
  %v229 = vpop.f32.mrb[0].mxu0
  %v230 = vadd.f32 0.0, %v229
  %v231 = vpop.f32.mrb[0].mxu0
  %232 = vmatprep.mubr.bf16.mxu0 0
  %233 = vmatmul.mubr.bf16.gmra.mrb[0].mxu0 %v115
  %v234 = vpop.f32.mrb[0].mxu0
  %v235 = vadd.f32 0.0, %v234
  %v236 = vpop.f32.mrb[0].mxu0
  %v237 = vpop.f32.mrb[0].mxu0
  %v238 = vadd.f32 0.0, %v237
  %v239 = vpop.f32.mrb[0].mxu0
  %240 = vmatprep.mubr.bf16.mxu0 0
  %241 = vmatmul.mubr.bf16.gmra.mrb[0].mxu0 %v116
  %v242 = vpop.f32.mrb[0].mxu0
  %v243 = vadd.f32 0.0, %v242
  %v244 = vpop.f32.mrb[0].mxu0
  %v245 = vpop.f32.mrb[0].mxu0
  %v246 = vadd.f32 0.0, %v245
  %v247 = vpop.f32.mrb[0].mxu0
  %248 = vmatprep.mubr.bf16.mxu0 0
  %249 = vmatmul.mubr.bf16.gmra.mrb[0].mxu0 %v117
  %v250 = vpop.f32.mrb[0].mxu0
  %v251 = vadd.f32 0.0, %v250
  %v252 = vpop.f32.mrb[0].mxu0
  %v253 = vpop.f32.mrb[0].mxu0
  %v254 = vadd.f32 0.0, %v253
  %v255 = vpop.f32.mrb[0].mxu0
  %256 = vmatprep.mubr.bf16.mxu0 0
  %257 = vmatmul.mubr.bf16.gmra.mrb[0].mxu0 %v118
  %v258 = vpop.f32.mrb[0].mxu0
  %v259 = vadd.f32 0.0, %v258
  %v260 = vpop.f32.mrb[0].mxu0
  %v261 = vpop.f32.mrb[0].mxu0
  %v262 = vadd.f32 0.0, %v261
  %v263 = vpop.f32.mrb[0].mxu0
  %264 = vmatprep.mubr.bf16.mxu0 0
  %265 = vmatmul.mubr.bf16.gmra.mrb[0].mxu0 %v119
  %v266 = vpop.f32.mrb[0].mxu0
  %v267 = vadd.f32 0.0, %v266
  %v268 = vpop.f32.mrb[0].mxu0
  %v269 = vpop.f32.mrb[0].mxu0
  %v270 = vadd.f32 0.0, %v269
  %v271 = vpop.f32.mrb[0].mxu0
  %272 = vdwg.mxu0
  %v273 = vadd.f32 %v32, %v211
  %v274 = vadd.f32 %v33, %v214
  %v275 = vadd.f32 %v34, %v219
  %v276 = vadd.f32 %v35, %v222
  %v277 = vadd.f32 %v36, %v227
  %v278 = vadd.f32 %v37, %v230
  %v279 = vadd.f32 %v38, %v235
  %v280 = vadd.f32 %v39, %v238
  %v281 = vadd.f32 %v40, %v243
  %v282 = vadd.f32 %v41, %v246
  %v283 = vadd.f32 %v42, %v251
  %v284 = vadd.f32 %v43, %v254
  %v285 = vadd.f32 %v44, %v259
  %v286 = vadd.f32 %v45, %v262
  %v287 = vadd.f32 %v46, %v267
  %v288 = vadd.f32 %v47, %v270
  %289 = vst [vmem:[#allocation2] sm:$0xff] %v273
  %290 = vst [vmem:[#allocation2 + $0x8] sm:$0xff] %v274
  %291 = vst [vmem:[#allocation2 + $0x10] sm:$0xff] %v275
  %292 = vst [vmem:[#allocation2 + $0x18] sm:$0xff] %v276
  %293 = vst [vmem:[#allocation2 + $0x20] sm:$0xff] %v277
  %294 = vst [vmem:[#allocation2 + $0x28] sm:$0xff] %v278
  %295 = vst [vmem:[#allocation2 + $0x30] sm:$0xff] %v279
  %296 = vst [vmem:[#allocation2 + $0x38] sm:$0xff] %v280
  %297 = vst [vmem:[#allocation2 + $0x40] sm:$0xff] %v281
  %298 = vst [vmem:[#allocation2 + $0x48] sm:$0xff] %v282
  %299 = vst [vmem:[#allocation2 + $0x50] sm:$0xff] %v283
  %300 = vst [vmem:[#allocation2 + $0x58] sm:$0xff] %v284
  %301 = vst [vmem:[#allocation2 + $0x60] sm:$0xff] %v285
  %302 = vst [vmem:[#allocation2 + $0x68] sm:$0xff] %v286
  %303 = vst [vmem:[#allocation2 + $0x70] sm:$0xff] %v287
  %304 = vst [vmem:[#allocation2 + $0x78] sm:$0xff] %v288
  // Predicated region
  $region14: #{_propagate.3} parent=0 // pred_check
    %p305 = pneg %p12
  $region15: #{_propagate.3} parent=0 // pred_check_branch
    %307 = sbr.rel (%p305) target = $region17
  $region16: #{_propagate.3} parent=0 // pred_region
    %v308 = vld [vmem:[#allocation2] sm:$0xff]
    %v309 = vld [vmem:[#allocation2 + $0x8] sm:$0xff]
    %v310 = vld [vmem:[#allocation2 + $0x10] sm:$0xff]
    %v311 = vld [vmem:[#allocation2 + $0x18] sm:$0xff]
    %v312 = vld [vmem:[#allocation2 + $0x20] sm:$0xff]
    %v313 = vld [vmem:[#allocation2 + $0x28] sm:$0xff]
    %v314 = vld [vmem:[#allocation2 + $0x30] sm:$0xff]
    %v315 = vld [vmem:[#allocation2 + $0x38] sm:$0xff]
    %v316 = vld [vmem:[#allocation2 + $0x40] sm:$0xff]
    %v317 = vld [vmem:[#allocation2 + $0x48] sm:$0xff]
    %v318 = vld [vmem:[#allocation2 + $0x50] sm:$0xff]
    %v319 = vld [vmem:[#allocation2 + $0x58] sm:$0xff]
    %v320 = vld [vmem:[#allocation2 + $0x60] sm:$0xff]
    %v321 = vld [vmem:[#allocation2 + $0x68] sm:$0xff]
    %v322 = vld [vmem:[#allocation2 + $0x70] sm:$0xff]
    %v323 = vld [vmem:[#allocation2 + $0x78] sm:$0xff]
    %324 = vst [vmem:[%s2] sm:$0xff] %v308
    %325 = vst [vmem:[%s2 + $0x8] sm:$0xff] %v309
    %326 = vst [vmem:[%s2 + $0x10] sm:$0xff] %v310
    %327 = vst [vmem:[%s2 + $0x18] sm:$0xff] %v311
    %328 = vst [vmem:[%s2 + $0x20] sm:$0xff] %v312
    %329 = vst [vmem:[%s2 + $0x28] sm:$0xff] %v313
    %330 = vst [vmem:[%s2 + $0x30] sm:$0xff] %v314
    %331 = vst [vmem:[%s2 + $0x38] sm:$0xff] %v315
    %332 = vst [vmem:[%s2 + $0x40] sm:$0xff] %v316
    %333 = vst [vmem:[%s2 + $0x48] sm:$0xff] %v317
    %334 = vst [vmem:[%s2 + $0x50] sm:$0xff] %v318
    %335 = vst [vmem:[%s2 + $0x58] sm:$0xff] %v319
    %336 = vst [vmem:[%s2 + $0x60] sm:$0xff] %v320
    %337 = vst [vmem:[%s2 + $0x68] sm:$0xff] %v321
    %338 = vst [vmem:[%s2 + $0x70] sm:$0xff] %v322
    %339 = vst [vmem:[%s2 + $0x78] sm:$0xff] %v323
  $region17: #{_propagate.3} parent=0 // pred_fallthru
    _
  // Predicated region
  $region18: #{_propagate.3} parent=0 // pred_check
    _
  $region19: #{_propagate.3} parent=0 // pred_check_branch
    %341 = sbr.rel (0) target = $region21
  $region20: #{_propagate.3} parent=0 // pred_region
    _
  $region21: #{_propagate.3} parent=0 // pred_fallthru
    _
  // Predicated region
  $region22: #{_propagate.3} parent=0 // pred_check
    _
  $region23: #{_propagate.3} parent=0 // pred_check_branch
    %343 = sbr.rel (0) target = $region25
  $region24: #{_propagate.3} parent=0 // pred_region
    _
  $region25: #{_propagate.3} parent=0 // pred_fallthru
    _

</llo_original>
